<compile_context>
chip_gen: v6e
topology: v6e:2x2x1
jax: 0.10.0
libtpu: 0.0.40
codegen_flags: <defaults>
</compile_context>

<pallas_src>
import jax
import jax.numpy as jnp
from jax.experimental import pallas as pl
from jax.experimental.pallas import tpu as pltpu

_LANE = 128
_BLOCK_BYTES = 8 << 20          # ~8 MiB per block, any dtype
_VMEM_LIMIT = 40 << 20          # covers double-buffered in+out + Mosaic scratch
_MIN_PALLAS_BYTES = 256 << 10   # below this, plain jnp beats kernel launch cost
_SPLIT_BYTES = 1 << 20          # only multi-core-split inputs above this
_MIN_BLOCKS_PER_CORE = 2        # keep each core's DMA pipeline primed


def _h_sigmoid_kernel(x_ref, o_ref):
    x = x_ref[...]
    # relu6(x + 3) * (1/6); weak-typed literals keep the native dtype
    # (no upcast for bf16 inputs).
    o_ref[...] = (jnp.clip(x + 3.0, 0.0, 6.0) * (1.0 / 6.0)).astype(o_ref.dtype)


def _h_sigmoid_jnp(x):
    return jnp.clip(x + 3.0, 0.0, 6.0) * (1.0 / 6.0)


def _sublane(dtype):
    # Sublane packing multiple per dtype: 8 (f32), 16 (bf16), 32 (8-bit).
    return {4: 8, 2: 16, 1: 32}.get(jnp.dtype(dtype).itemsize, 8)


def _round_up(a, b):
    return ((a + b - 1) // b) * b


def _num_tensorcores():
    # v7x has 2 TensorCores per chip; v5e/v6e have 1.
    try:
        kind = jax.devices()[0].device_kind.lower()
    except Exception:
        return 1
    return 2 if ("v7" in kind or "7x" in kind) else 1


def _h_sigmoid_2d(x2d, *, fuse_input=False):
    """Run the Pallas kernel over a lane-dense (rows, 128) slab."""
    rows, lanes = x2d.shape
    dtype = x2d.dtype
    itemsize = jnp.dtype(dtype).itemsize
    sub = _sublane(dtype)
    n_cores = _num_tensorcores()
    total_bytes = rows * lanes * itemsize

    # Byte-based block sizing: ~8 MiB per block regardless of dtype.
    block_rows = max(sub, _BLOCK_BYTES // (lanes * itemsize))

    if n_cores > 1 and total_bytes >= _SPLIT_BYTES:
        # Multi-TC chip (v7x): grid length is a multiple of the core count
        # with >= 2 blocks per core so both TCs stream HBM in parallel.
        nblocks = max(pl.cdiv(rows, block_rows), _MIN_BLOCKS_PER_CORE * n_cores)
        nblocks = _round_up(nblocks, n_cores)
        br = max(sub, _round_up(pl.cdiv(rows, nblocks), sub))
    elif rows <= block_rows:
        # Single-core (or small slab): one full-extent block, no forced split.
        br = rows
    else:
        br = _round_up(block_rows, sub)

    grid = (pl.cdiv(rows, br),)

    cost = pl.CostEstimate(
        flops=4 * rows * lanes,
        transcendentals=0,
        bytes_accessed=2 * rows * lanes * itemsize,
    )
    compiler_params = pltpu.CompilerParams(
        dimension_semantics=("parallel",),
        vmem_limit_bytes=_VMEM_LIMIT,
        # On the unaligned path, let XLA fuse the prefix slice/reshape
        # producer into the input DMA instead of materializing a copy.
        allow_input_fusion=[True] if fuse_input else None,
    )

    return pl.pallas_call(
        _h_sigmoid_kernel,
        out_shape=jax.ShapeDtypeStruct((rows, lanes), dtype),
        grid_spec=pltpu.PrefetchScalarGridSpec(
            num_scalar_prefetch=0,
            grid=grid,
            in_specs=[pl.BlockSpec((br, lanes), lambda i: (i, 0))],
            out_specs=pl.BlockSpec((br, lanes), lambda i: (i, 0)),
        ),
        compiler_params=compiler_params,
        cost_estimate=cost,
    )(x2d)


def h_sigmoid(x, *, min_pallas_bytes=_MIN_PALLAS_BYTES):
    """Hard-sigmoid relu6(x + 3) / 6, elementwise, for any input shape."""
    orig_shape = x.shape
    if x.size == 0:
        return x
    # torch's `/ 6` is true division -> float result; promote non-float input.
    if not jnp.issubdtype(x.dtype, jnp.floating):
        x = x.astype(jnp.float32)
    dtype = x.dtype
    n = x.size
    itemsize = jnp.dtype(dtype).itemsize

    # Small inputs: a 1-step grid pays launch + pipeline prologue/epilogue
    # that exceed the fused XLA elementwise cost.
    if n * itemsize < min_pallas_bytes:
        return _h_sigmoid_jnp(x).reshape(orig_shape)

    x_flat = jnp.reshape(x, (-1,))
    n_main = (n // _LANE) * _LANE

    if n_main == n:
        # Fast path: 128-aligned (virtually all NCHW activation sizes).
        out = _h_sigmoid_2d(x_flat.reshape(n // _LANE, _LANE))
        return out.reshape(orig_shape)

    if n_main == 0:
        # Fewer than 128 elements total; not worth a kernel.
        return _h_sigmoid_jnp(x).reshape(orig_shape)

    # Rare unaligned path: stream the aligned prefix through Pallas, compute
    # the (<128 element) tail with plain jnp -- no full-array pad / slice.
    main = x_flat[:n_main].reshape(n_main // _LANE, _LANE)
    out_main = _h_sigmoid_2d(main, fuse_input=True)
    tail_out = _h_sigmoid_jnp(x_flat[n_main:])
    out_flat = jnp.concatenate([out_main.reshape(-1), tail_out])
    return out_flat.reshape(orig_shape)


if __name__ == "__main__":
    key = jax.random.PRNGKey(0)

    def ref(x):
        return jnp.clip(x.astype(jnp.float32) + 3.0, 0.0, 6.0) / 6.0

    # 1) Small NCHW input -> jnp fallback path.
    x0 = jax.random.normal(key, (2, 4, 16, 16), dtype=jnp.float32) * 4.0
    y0 = jax.block_until_ready(h_sigmoid(x0))
    assert y0.shape == x0.shape
    assert jnp.allclose(y0, ref(x0), atol=1e-6), "mismatch (fallback path)"

    # 2) Same small input forced through the Pallas kernel (aligned path).
    y1 = jax.block_until_ready(h_sigmoid(x0, min_pallas_bytes=0))
    assert y1.shape == x0.shape
    assert jnp.allclose(y1, ref(x0), atol=1e-6), "mismatch (pallas aligned path)"

    # 3) Unaligned size forced through the Pallas-prefix + jnp-tail path.
    x2 = jax.random.normal(jax.random.PRNGKey(1), (3, 5, 7, 9), dtype=jnp.float32) * 4.0
    y2 = jax.block_until_ready(h_sigmoid(x2, min_pallas_bytes=0))
    assert y2.shape == x2.shape
    assert jnp.allclose(y2, ref(x2), atol=1e-6), "mismatch (pallas unaligned path)"

    # 4) bf16 input through the Pallas kernel (bf16 math, looser tolerance).
    x3 = jax.random.normal(jax.random.PRNGKey(2), (2, 8, 32, 32), dtype=jnp.bfloat16) * 4.0
    y3 = jax.block_until_ready(h_sigmoid(x3, min_pallas_bytes=0))
    assert y3.shape == x3.shape and y3.dtype == jnp.bfloat16
    assert jnp.allclose(y3.astype(jnp.float32), ref(x3), atol=3e-2), "mismatch (bf16 path)"

    # 5) Multi-MiB activation exercising real multi-block streaming.
    x4 = jax.random.normal(jax.random.PRNGKey(3), (2, 96, 64, 64), dtype=jnp.float32) * 4.0
    y4 = jax.block_until_ready(h_sigmoid(x4))
    assert y4.shape == x4.shape
    assert jnp.allclose(y4, ref(x4), atol=1e-6), "mismatch (large streaming path)"

    print("KERNEL_OK")
</pallas_src>

<mosaic_0001>
module attributes {stable_mosaic.version = 11 : i64} {
  func.func @_h_sigmoid_kernel(%arg0: i32, %arg1: memref<16x128xf32, #tpu.memory_space<vmem>>, %arg2: memref<16x128xf32, #tpu.memory_space<vmem>>) attributes {dimension_semantics = [#tpu.dimension_semantics<parallel>], iteration_bounds = array<i64: 1>, scalar_prefetch = 0 : i64, scratch_operands = 0 : i64, tpu.core_type = #tpu.core_type<tc>, window_params = [{transform_indices = @transform_0, window_bounds = array<i64: 16, 128>}, {transform_indices = @transform_1, window_bounds = array<i64: 16, 128>}]} {
    %c0 = arith.constant 0 : index
    %c0_0 = arith.constant 0 : index
    %0 = vector.load %arg1[%c0, %c0_0] : memref<16x128xf32, #tpu.memory_space<vmem>>, vector<16x128xf32>
    %cst = arith.constant 3.000000e+00 : f32
    %1 = vector.broadcast %cst : f32 to vector<16x128xf32>
    %2 = arith.addf %0, %1 : vector<16x128xf32>
    %cst_1 = arith.constant 0.000000e+00 : f32
    %cst_2 = arith.constant 6.000000e+00 : f32
    %3 = vector.broadcast %cst_1 : f32 to vector<16x128xf32>
    %4 = arith.maximumf %3, %2 : vector<16x128xf32>
    %5 = vector.broadcast %cst_2 : f32 to vector<16x128xf32>
    %6 = arith.minimumf %5, %4 : vector<16x128xf32>
    %cst_3 = arith.constant 0.166666672 : f32
    %7 = vector.broadcast %cst_3 : f32 to vector<16x128xf32>
    %8 = arith.mulf %6, %7 : vector<16x128xf32>
    %c0_4 = arith.constant 0 : index
    %c0_5 = arith.constant 0 : index
    %9 = vector.load %arg2[%c0_4, %c0_5] : memref<16x128xf32, #tpu.memory_space<vmem>>, vector<16x128xf32>
    tpu.vector_store %arg2[%c0_4, %c0_5], %8 {strides = array<i32>} : memref<16x128xf32, #tpu.memory_space<vmem>>, vector<16x128xf32>,
    return
  }
  func.func @transform_0(%arg0: i32) -> (i32, i32) {
    %c0_i32 = arith.constant 0 : i32
    %c0_i32_0 = arith.constant 0 : i32
    return %arg0, %c0_i32 : i32, i32
  }
  func.func @transform_1(%arg0: i32) -> (i32, i32) {
    %c0_i32 = arith.constant 0 : i32
    %c0_i32_0 = arith.constant 0 : i32
    return %arg0, %c0_i32 : i32, i32
  }
}

</mosaic_0001>

<llo_original>
// kernel: tpu_custom_call.1
$region0: #{tpu_custom_call.1}
  #allocation0 [shape = 'u32[]', space=smem, size = 0x4, offset = 0x4, fixed_abs, tag = 'smem constant byte address 0x4 - core index']
  #allocation1 [shape = 'u32[144,128]{1,0:T(1,128)}', space=vmem, size = 0x12000, scoped, tag = 'internal scratch']
  %s0 = inlined_call_operand.hbm [shape: f32[16,128], index: 0, kind: input, shape index: {}]
  %s1 = inlined_call_operand.hbm [shape: f32[16,128], index: 1, kind: output, shape index: {}]
  %s2 = sld [smem:[#allocation0]]
  $region18: #{tpu_custom_call.1} parent=0
    _
  %s4 = ssub.s32 1, %s2
  %s5 = scalar_select 0, %s4, %s2
  $region1: #{tpu_custom_call.1} parent=0
    #allocation2 [shape = 'u8[8192]{0}', space=vmem, size = 0x2000, scoped, tag = 'input window, operand 0, single buffered']
    #allocation3 [shape = 's32[1]{0}', space=sflag, size = 0x4, scoped, tag = 'scoped memory for tpu_custom_call.1']
    #allocation4 [shape = 's32[1]{0}', space=sflag, size = 0x4, scoped, tag = 'scoped memory for tpu_custom_call.1']
    #allocation5 [shape = 'u8[8192]{0}', space=vmem, size = 0x2000, scoped, tag = 'output window, operand 0, single buffered']
    %6 = vsyncpa [#allocation3], 0
    %7 = vsyncpa [#allocation4], 0
    // Predicated region
    $region2: #{tpu_custom_call.1} parent=1 // pred_check
      _
    $region3: #{tpu_custom_call.1} parent=1 // pred_check_branch
      %9 = sbr.rel (0) target = $region5
    $region4: #{tpu_custom_call.1} parent=1 // pred_region
      %s11 = ssub.s32 256, 256
      %12 = vsyncadd [#allocation3], %s11
      %s13 = sshll.u32 [#allocation2], 4
      %s14 = int_to_ptr.vmem [resolvable:$true] %s13
      %19 = dma.hbm_to_vmem [thread:$0]  %s0, 256, %s14, [#allocation3], 128, 128, 8
    $region5: #{tpu_custom_call.1} parent=1 // pred_fallthru
      _
    // Predicated region
    $region6: #{tpu_custom_call.1} parent=1 // pred_check
      _
    $region7: #{tpu_custom_call.1} parent=1 // pred_check_branch
      %21 = sbr.rel (0) target = $region9
    $region8: #{tpu_custom_call.1} parent=1 // pred_region
      %22 = dma.done [#allocation3], 256
    $region9: #{tpu_custom_call.1} parent=1 // pred_fallthru
      _
    %v23 = vld [vmem:[#allocation2] sm:$0xff]
    %v24 = vld [vmem:[#allocation2 + $0x8] sm:$0xff]
    %v25 = vadd.f32 %v23, 3.0
    %v26 = vadd.f32 %v24, 3.0
    %v27 = vmax.f32 %v25, 0.0
    %v28 = vmax.f32 %v26, 0.0
    %v29 = vmin.f32 %v27, 6.0
    %v30 = vmin.f32 %v28, 6.0
    %v31 = vmul.f32 %v29, 0.16666667
    %v32 = vmul.f32 %v30, 0.16666667
    %33 = vst [vmem:[#allocation5] sm:$0xff] %v31
    %34 = vst [vmem:[#allocation5 + $0x8] sm:$0xff] %v32
    // Predicated region
    $region10: #{tpu_custom_call.1} parent=1 // pred_check
      _
    $region11: #{tpu_custom_call.1} parent=1 // pred_check_branch
      %36 = sbr.rel (0) target = $region13
    $region12: #{tpu_custom_call.1} parent=1 // pred_region
      %s38 = ssub.s32 256, 256
      %39 = vsyncadd [#allocation4], %s38
      %s40 = sshll.u32 [#allocation5], 4
      %s41 = int_to_ptr.vmem [resolvable:$true] %s40
      %46 = dma.vmem_to_hbm [thread:$0]  %s41, 256, %s1, [#allocation4], 128, 128, 8
    $region13: #{tpu_custom_call.1} parent=1 // pred_fallthru
      _
    // Predicated region
    $region14: #{tpu_custom_call.1} parent=1 // pred_check
      _
    $region15: #{tpu_custom_call.1} parent=1 // pred_check_branch
      %48 = sbr.rel (0) target = $region17
    $region16: #{tpu_custom_call.1} parent=1 // pred_region
      %49 = dma.done [#allocation4], 256
    $region17: #{tpu_custom_call.1} parent=1 // pred_fallthru
      _
    %50 = vsyncpa [#allocation3], 1
    %51 = vsyncpa [#allocation4], 1

</llo_original>
